<compile_context>
chip_gen: v5e
topology: v5e:2x2
jax: 0.10.0
libtpu: 0.0.40
codegen_flags: <defaults>
</compile_context>

<pallas_src>
import functools

import jax
import jax.numpy as jnp
from jax import lax
from jax.experimental import pallas as pl
from jax.experimental.pallas import tpu as pltpu


def _pick_tile(dim, candidates):
    """Largest candidate tile that evenly divides `dim`, else the full dim."""
    for c in candidates:
        if dim >= c and dim % c == 0:
            return c
    return dim


# ----------------------------------------------------------------------------
# Kernel 1: tiled linear  y = x @ W + b
#   bf16 MXU operands, f32 accumulation in VMEM scratch, bias added in f32.
#   Used once for the fused QKV projection and once for the output projection.
# ----------------------------------------------------------------------------
def _linear_kernel(x_ref, w_ref, b_ref, o_ref, acc_ref):
    k = pl.program_id(2)

    @pl.when(k == 0)
    def _():
        acc_ref[...] = jnp.zeros_like(acc_ref)

    acc_ref[...] += jnp.dot(x_ref[...], w_ref[...],
                            preferred_element_type=jnp.float32)

    @pl.when(k == pl.num_programs(2) - 1)
    def _():
        o_ref[...] = (acc_ref[...] + b_ref[...]).astype(o_ref.dtype)


def pallas_linear(x, w, b, *, out_dtype=jnp.float32):
    """x: (M, D) bf16, w: (D, H) bf16, b: (H,) f32 -> (M, H) out_dtype."""
    M, D = x.shape
    H = w.shape[1]
    tm = _pick_tile(M, (256, 128))
    tn = _pick_tile(H, (256, 128))
    tk = _pick_tile(D, (512, 256, 128))
    b2d = b.reshape(1, H).astype(jnp.float32)

    # VMEM budget for the chosen tiles: double-buffered bf16 inputs,
    # double-buffered output + f32 accumulator; keep headroom, cap < 64 MiB
    # (v7x per-core VMEM) so the same tiling compiles on v5e/v6e/v7x.
    tile_bytes = (2 * (tm * tk + tk * tn) * x.dtype.itemsize
                  + 2 * tm * tn * jnp.dtype(out_dtype).itemsize
                  + tm * tn * 4 + 2 * tn * 4)
    vmem_limit = int(min(max(4 * tile_bytes, 8 << 20), 48 << 20))

    grid = (pl.cdiv(M, tm), pl.cdiv(H, tn), pl.cdiv(D, tk))
    cost = pl.CostEstimate(
        flops=2 * M * H * D,
        transcendentals=0,
        bytes_accessed=int((M * D + D * H) * x.dtype.itemsize
                           + M * H * jnp.dtype(out_dtype).itemsize),
    )
    return pl.pallas_call(
        _linear_kernel,
        out_shape=jax.ShapeDtypeStruct((M, H), out_dtype),
        grid_spec=pltpu.PrefetchScalarGridSpec(
            num_scalar_prefetch=0,
            grid=grid,
            in_specs=[
                pl.BlockSpec((tm, tk), lambda i, j, k: (i, k)),
                pl.BlockSpec((tk, tn), lambda i, j, k: (k, j)),
                pl.BlockSpec((1, tn), lambda i, j, k: (0, j)),
            ],
            out_specs=pl.BlockSpec((tm, tn), lambda i, j, k: (i, j)),
            scratch_shapes=[pltpu.VMEM((tm, tn), jnp.float32)],
        ),
        compiler_params=pltpu.CompilerParams(
            dimension_semantics=("parallel", "parallel", "arbitrary"),
            vmem_limit_bytes=vmem_limit),
        cost_estimate=cost,
    )(x, w, b2d)


# ----------------------------------------------------------------------------
# Kernel 2: per-batch attention over ALL heads in one grid step.
#   q: (head, S, dh), k: (head, dh, S)  (the module's raw views),
#   v: (head, S, dh)  (module's v-view pre-transposed by the wrapper so the
#   second matmul consumes it as (S, dh) -- no in-kernel transpose needed).
#   Output is written lane-dense as (S, head*dh), which IS the module's
#   b.view(B, -1, S).transpose(1, 2) -- no separate HBM transpose afterwards.
# ----------------------------------------------------------------------------
def _attn_kernel(q_ref, k_ref, v_ref, o_ref):
    head, _, dh = q_ref.shape
    # TODO(synk): for long sequences, convert to an online (flash-style)
    # softmax with a KV-block grid axis instead of materializing (S, S).
    for h in range(head):                     # static unroll; head is small
        # scores = q_h @ k_h  (bf16 operands, f32 accumulate on the MXU)
        s = jnp.dot(q_ref[h], k_ref[h], preferred_element_type=jnp.float32)
        s = s - jnp.max(s, axis=-1, keepdims=True)
        e = jnp.exp(s)
        denom = jnp.sum(e, axis=-1, keepdims=True)
        w = e * pl.reciprocal(denom, approx=True)     # softmax(dim=-1), f32
        # Module computes b_h = v_h @ w with v_h = (dh, S); we want its
        # transpose (S, dh) for the lane-dense output:
        #   b_h^T[s, d] = sum_t w[t, s] * v_h[d, t] = sum_t w[t, s] * v_t[t, d]
        out_h = lax.dot_general(
            w, v_ref[h].astype(jnp.float32),
            dimension_numbers=(((0,), (0,)), ((), ())),     # contract dim 0
            preferred_element_type=jnp.float32)             # (S, dh)
        o_ref[:, h * dh:(h + 1) * dh] = out_h.astype(o_ref.dtype)


def pallas_attention(q, k, v_t, *, out_dtype=jnp.bfloat16):
    """q: (B, head, S, dh), k: (B, head, dh, S), v_t: (B, head, S, dh)
       -> (B, S, head*dh)  (== b.view(B, -1, S).transpose(1, 2))."""
    B, NH, S, dh = q.shape
    hidden = NH * dh

    block_bytes = (2 * 3 * NH * S * dh * q.dtype.itemsize
                   + 2 * S * hidden * jnp.dtype(out_dtype).itemsize
                   + 4 * NH * S * S * 4)      # headroom for scores/probs
    vmem_limit = int(min(max(4 * block_bytes, 8 << 20), 48 << 20))

    cost = pl.CostEstimate(
        flops=4 * B * NH * S * S * dh,
        transcendentals=B * NH * S * S,
        bytes_accessed=int(3 * B * NH * S * dh * q.dtype.itemsize
                           + B * S * hidden * jnp.dtype(out_dtype).itemsize),
    )
    return pl.pallas_call(
        _attn_kernel,
        out_shape=jax.ShapeDtypeStruct((B, S, hidden), out_dtype),
        grid_spec=pltpu.PrefetchScalarGridSpec(
            num_scalar_prefetch=0,
            grid=(B,),
            in_specs=[
                pl.BlockSpec((None, NH, S, dh), lambda b: (b, 0, 0, 0)),
                pl.BlockSpec((None, NH, dh, S), lambda b: (b, 0, 0, 0)),
                pl.BlockSpec((None, NH, S, dh), lambda b: (b, 0, 0, 0)),
            ],
            out_specs=pl.BlockSpec((None, S, hidden), lambda b: (b, 0, 0)),
        ),
        compiler_params=pltpu.CompilerParams(
            dimension_semantics=("parallel",),
            vmem_limit_bytes=vmem_limit),
        cost_estimate=cost,
    )(q, k, v_t)


# ----------------------------------------------------------------------------
# Module-equivalent forward
# ----------------------------------------------------------------------------
def multi_head_attention_forward(data, params, head, hidden_size):
    B, S, D = data.shape
    dh = hidden_size // head
    compute = jnp.bfloat16

    x2d = data.reshape(B * S, D).astype(compute)

    # Fused Q/K/V projection: one tiled matmul with (D, 3*hidden) weights.
    wqkv = jnp.concatenate(
        [params["wq"], params["wk"], params["wv"]], axis=1).astype(compute)
    bqkv = jnp.concatenate([params["bq"], params["bk"], params["bv"]])
    qkv = pallas_linear(x2d, wqkv, bqkv, out_dtype=compute)   # (B*S, 3*hidden)
    qkv = qkv.reshape(B, S, 3 * hidden_size)
    q = qkv[..., :hidden_size]
    k = qkv[..., hidden_size:2 * hidden_size]
    v = qkv[..., 2 * hidden_size:]

    # Reproduce the module's raw (non-transposing) views exactly (glue).
    q = q.reshape(B, head, S, dh)                    # q.view(B, head, S, dh)
    k = k.reshape(B, head, dh, S)                    # k.view(B, head, dh, S)
    v = v.reshape(B, head, dh, S)                    # v.view(B, head, dh, S)
    # Pre-arrange v as (S, dh) per head so the attention kernel can emit the
    # output directly in the lane-dense (B, S, hidden) layout.
    v_t = v.transpose(0, 1, 3, 2)                    # (B, head, S, dh)

    # softmax(q @ k) then v @ weight, all heads of a batch per grid step; the
    # result already equals b.view(B, -1, S).transpose(1, 2).
    attn = pallas_attention(q, k, v_t, out_dtype=compute)     # (B, S, hidden)

    # Output projection.
    out = pallas_linear(attn.reshape(B * S, hidden_size),
                        params["wo"].astype(compute), params["bo"],
                        out_dtype=jnp.float32)
    return out.reshape(B, S, D)


# ----------------------------------------------------------------------------
# Deterministic parameter init (mimics nn.Linear's U(-1/sqrt(fan_in), ...))
# ----------------------------------------------------------------------------
def init_params(key, input_size, hidden_size):
    def linear_init(k, fan_in, fan_out):
        k1, k2 = jax.random.split(k)
        bound = 1.0 / (fan_in ** 0.5)
        w = jax.random.uniform(k1, (fan_in, fan_out), jnp.float32, -bound, bound)
        b = jax.random.uniform(k2, (fan_out,), jnp.float32, -bound, bound)
        return w, b

    kq, kk, kv, ko = jax.random.split(key, 4)
    wq, bq = linear_init(kq, input_size, hidden_size)
    wk, bk = linear_init(kk, input_size, hidden_size)
    wv, bv = linear_init(kv, input_size, hidden_size)
    wo, bo = linear_init(ko, hidden_size, input_size)
    return dict(wq=wq, bq=bq, wk=wk, bk=bk, wv=wv, bv=bv, wo=wo, bo=bo)


# ----------------------------------------------------------------------------
# Pure-JAX reference mirroring the PyTorch forward line by line, with the same
# bf16-operand / f32-accumulate numerics as the kernels (exact softmax).
# ----------------------------------------------------------------------------
def reference_forward(data, params, head, hidden_size, compute=jnp.bfloat16):
    B, S, D = data.shape
    dh = hidden_size // head

    def lin(x, w, b):
        return jnp.dot(x.astype(compute), w.astype(compute),
                       preferred_element_type=jnp.float32) + b

    q = lin(data, params["wq"], params["bq"]).astype(compute)
    k = lin(data, params["wk"], params["bk"]).astype(compute)
    v = lin(data, params["wv"], params["bv"]).astype(compute)
    q = q.reshape(B, head, S, dh)
    k = k.reshape(B, head, dh, S)
    v = v.reshape(B, head, dh, S)
    scores = jnp.einsum("bhsd,bhdt->bhst", q, k,
                        preferred_element_type=jnp.float32)
    weight = jax.nn.softmax(scores, axis=-1)
    b = jnp.einsum("bhdt,bhts->bhds", v.astype(jnp.float32), weight,
                   preferred_element_type=jnp.float32)
    b = b.reshape(B, hidden_size, S).transpose(0, 2, 1)        # (B, S, hidden)
    return lin(b, params["wo"], params["bo"])


if __name__ == "__main__":
    # Small shapes consistent with the module's forward.
    batch, seq_len = 2, 8
    input_size, hidden_size, head = 16, 32, 4

    key = jax.random.PRNGKey(0)
    k_data, k_params = jax.random.split(key)
    data = jax.random.normal(k_data, (batch, seq_len, input_size), jnp.float32)
    params = init_params(k_params, input_size, hidden_size)

    fwd = jax.jit(functools.partial(multi_head_attention_forward,
                                    head=head, hidden_size=hidden_size))
    out = jax.block_until_ready(fwd(data, params))

    ref = reference_forward(data, params, head, hidden_size)
    assert out.shape == (batch, seq_len, input_size)
    # bf16 MXU operands + approx reciprocal -> compare with a modest tolerance.
    assert jnp.allclose(out, ref, atol=2e-2, rtol=2e-2), "mismatch vs reference"

    print("KERNEL_OK")
</pallas_src>

<mosaic_0001>
module attributes {stable_mosaic.version = 11 : i64} {
  func.func @_attn_kernel(%arg0: i32, %arg1: memref<1x4x8x8xbf16, #tpu.memory_space<vmem>>, %arg2: memref<1x4x8x8xbf16, #tpu.memory_space<vmem>>, %arg3: memref<1x4x8x8xbf16, #tpu.memory_space<vmem>>, %arg4: memref<1x8x32xbf16, #tpu.memory_space<vmem>>) attributes {dimension_semantics = [#tpu.dimension_semantics<parallel>], iteration_bounds = array<i64: 2>, scalar_prefetch = 0 : i64, scratch_operands = 0 : i64, tpu.core_type = #tpu.core_type<tc>, window_params = [{transform_indices = @transform_0, window_bounds = array<i64: 1, 4, 8, 8>}, {transform_indices = @transform_1, window_bounds = array<i64: 1, 4, 8, 8>}, {transform_indices = @transform_2, window_bounds = array<i64: 1, 4, 8, 8>}, {transform_indices = @transform_3, window_bounds = array<i64: 1, 8, 32>}]} {
    %c0 = arith.constant 0 : index
    %c0_0 = arith.constant 0 : index
    %c0_1 = arith.constant 0 : index
    %c0_2 = arith.constant 0 : index
    %0 = vector.load %arg1[%c0, %c0_0, %c0_1, %c0_2] : memref<1x4x8x8xbf16, #tpu.memory_space<vmem>>, vector<1x1x8x8xbf16>
    %1 = vector.shape_cast %0 : vector<1x1x8x8xbf16> to vector<8x8xbf16>
    %c0_3 = arith.constant 0 : index
    %c0_4 = arith.constant 0 : index
    %c0_5 = arith.constant 0 : index
    %c0_6 = arith.constant 0 : index
    %2 = vector.load %arg2[%c0_3, %c0_4, %c0_5, %c0_6] : memref<1x4x8x8xbf16, #tpu.memory_space<vmem>>, vector<1x1x8x8xbf16>
    %3 = vector.shape_cast %2 : vector<1x1x8x8xbf16> to vector<8x8xbf16>
    %cst = arith.constant dense<0.000000e+00> : vector<8x8xf32>
    %4 = tpu.matmul %1, %3, %cst {dimension_numbers = #tpu.dot_dimension_numbers<[1], [0], [0], [1], [0, 0, 1, 1], [], []>} : vector<8x8xbf16>, vector<8x8xbf16>, vector<8x8xf32> -> vector<8x8xf32>
    %cst_7 = arith.constant dense<0xFF800000> : vector<8xf32>
    %5 = vector.multi_reduction <maximumf>, %4, %cst_7 [1] : vector<8x8xf32> to vector<8xf32>
    %6 = vector.shape_cast %5 : vector<8xf32> to vector<8x1xf32>
    %7 = vector.broadcast %6 : vector<8x1xf32> to vector<8x8xf32>
    %8 = arith.subf %4, %7 : vector<8x8xf32>
    %9 = math.exp %8 : vector<8x8xf32>
    %cst_8 = arith.constant dense<0.000000e+00> : vector<8xf32>
    %10 = vector.multi_reduction <add>, %9, %cst_8 [1] : vector<8x8xf32> to vector<8xf32>
    %11 = vector.shape_cast %10 : vector<8xf32> to vector<8x1xf32>
    %12 = tpu.reciprocal %11 {approx = true} : vector<8x1xf32> -> vector<8x1xf32>
    %13 = vector.broadcast %12 : vector<8x1xf32> to vector<8x8xf32>
    %14 = arith.mulf %9, %13 : vector<8x8xf32>
    %c0_9 = arith.constant 0 : index
    %c0_10 = arith.constant 0 : index
    %c0_11 = arith.constant 0 : index
    %c0_12 = arith.constant 0 : index
    %15 = vector.load %arg3[%c0_9, %c0_10, %c0_11, %c0_12] : memref<1x4x8x8xbf16, #tpu.memory_space<vmem>>, vector<1x1x8x8xbf16>
    %16 = vector.shape_cast %15 : vector<1x1x8x8xbf16> to vector<8x8xbf16>
    %17 = arith.extf %16 : vector<8x8xbf16> to vector<8x8xf32>
    %cst_13 = arith.constant dense<0.000000e+00> : vector<8x8xf32>
    %18 = tpu.matmul %14, %17, %cst_13 {dimension_numbers = #tpu.dot_dimension_numbers<[0], [0], [1], [1], [0, 1, 1, 1], [], []>} : vector<8x8xf32>, vector<8x8xf32>, vector<8x8xf32> -> vector<8x8xf32>
    %19 = arith.truncf %18 : vector<8x8xf32> to vector<8x8xbf16>
    %c0_14 = arith.constant 0 : index
    %c0_15 = arith.constant 0 : index
    %c0_16 = arith.constant 0 : index
    %20 = vector.load %arg4[%c0_14, %c0_15, %c0_16] : memref<1x8x32xbf16, #tpu.memory_space<vmem>>, vector<1x8x8xbf16>
    %21 = vector.shape_cast %20 : vector<1x8x8xbf16> to vector<8x8xbf16>
    %22 = vector.shape_cast %19 : vector<8x8xbf16> to vector<1x8x8xbf16>
    tpu.vector_store %arg4[%c0_14, %c0_15, %c0_16], %22 {strides = array<i32>} : memref<1x8x32xbf16, #tpu.memory_space<vmem>>, vector<1x8x8xbf16>,
    %c0_17 = arith.constant 0 : index
    %c1 = arith.constant 1 : index
    %c0_18 = arith.constant 0 : index
    %c0_19 = arith.constant 0 : index
    %23 = vector.load %arg1[%c0_17, %c1, %c0_18, %c0_19] : memref<1x4x8x8xbf16, #tpu.memory_space<vmem>>, vector<1x1x8x8xbf16>
    %24 = vector.shape_cast %23 : vector<1x1x8x8xbf16> to vector<8x8xbf16>
    %c0_20 = arith.constant 0 : index
    %c1_21 = arith.constant 1 : index
    %c0_22 = arith.constant 0 : index
    %c0_23 = arith.constant 0 : index
    %25 = vector.load %arg2[%c0_20, %c1_21, %c0_22, %c0_23] : memref<1x4x8x8xbf16, #tpu.memory_space<vmem>>, vector<1x1x8x8xbf16>
    %26 = vector.shape_cast %25 : vector<1x1x8x8xbf16> to vector<8x8xbf16>
    %cst_24 = arith.constant dense<0.000000e+00> : vector<8x8xf32>
    %27 = tpu.matmul %24, %26, %cst_24 {dimension_numbers = #tpu.dot_dimension_numbers<[1], [0], [0], [1], [0, 0, 1, 1], [], []>} : vector<8x8xbf16>, vector<8x8xbf16>, vector<8x8xf32> -> vector<8x8xf32>
    %cst_25 = arith.constant dense<0xFF800000> : vector<8xf32>
    %28 = vector.multi_reduction <maximumf>, %27, %cst_25 [1] : vector<8x8xf32> to vector<8xf32>
    %29 = vector.shape_cast %28 : vector<8xf32> to vector<8x1xf32>
    %30 = vector.broadcast %29 : vector<8x1xf32> to vector<8x8xf32>
    %31 = arith.subf %27, %30 : vector<8x8xf32>
    %32 = math.exp %31 : vector<8x8xf32>
    %cst_26 = arith.constant dense<0.000000e+00> : vector<8xf32>
    %33 = vector.multi_reduction <add>, %32, %cst_26 [1] : vector<8x8xf32> to vector<8xf32>
    %34 = vector.shape_cast %33 : vector<8xf32> to vector<8x1xf32>
    %35 = tpu.reciprocal %34 {approx = true} : vector<8x1xf32> -> vector<8x1xf32>
    %36 = vector.broadcast %35 : vector<8x1xf32> to vector<8x8xf32>
    %37 = arith.mulf %32, %36 : vector<8x8xf32>
    %c0_27 = arith.constant 0 : index
    %c1_28 = arith.constant 1 : index
    %c0_29 = arith.constant 0 : index
    %c0_30 = arith.constant 0 : index
    %38 = vector.load %arg3[%c0_27, %c1_28, %c0_29, %c0_30] : memref<1x4x8x8xbf16, #tpu.memory_space<vmem>>, vector<1x1x8x8xbf16>
    %39 = vector.shape_cast %38 : vector<1x1x8x8xbf16> to vector<8x8xbf16>
    %40 = arith.extf %39 : vector<8x8xbf16> to vector<8x8xf32>
    %cst_31 = arith.constant dense<0.000000e+00> : vector<8x8xf32>
    %41 = tpu.matmul %37, %40, %cst_31 {dimension_numbers = #tpu.dot_dimension_numbers<[0], [0], [1], [1], [0, 1, 1, 1], [], []>} : vector<8x8xf32>, vector<8x8xf32>, vector<8x8xf32> -> vector<8x8xf32>
    %42 = arith.truncf %41 : vector<8x8xf32> to vector<8x8xbf16>
    %c0_32 = arith.constant 0 : index
    %c0_33 = arith.constant 0 : index
    %c8 = arith.constant 8 : index
    %43 = vector.load %arg4[%c0_32, %c0_33, %c8] : memref<1x8x32xbf16, #tpu.memory_space<vmem>>, vector<1x8x8xbf16>
    %44 = vector.shape_cast %43 : vector<1x8x8xbf16> to vector<8x8xbf16>
    %45 = vector.shape_cast %42 : vector<8x8xbf16> to vector<1x8x8xbf16>
    tpu.vector_store %arg4[%c0_32, %c0_33, %c8], %45 {strides = array<i32>} : memref<1x8x32xbf16, #tpu.memory_space<vmem>>, vector<1x8x8xbf16>,
    %c0_34 = arith.constant 0 : index
    %c2 = arith.constant 2 : index
    %c0_35 = arith.constant 0 : index
    %c0_36 = arith.constant 0 : index
    %46 = vector.load %arg1[%c0_34, %c2, %c0_35, %c0_36] : memref<1x4x8x8xbf16, #tpu.memory_space<vmem>>, vector<1x1x8x8xbf16>
    %47 = vector.shape_cast %46 : vector<1x1x8x8xbf16> to vector<8x8xbf16>
    %c0_37 = arith.constant 0 : index
    %c2_38 = arith.constant 2 : index
    %c0_39 = arith.constant 0 : index
    %c0_40 = arith.constant 0 : index
    %48 = vector.load %arg2[%c0_37, %c2_38, %c0_39, %c0_40] : memref<1x4x8x8xbf16, #tpu.memory_space<vmem>>, vector<1x1x8x8xbf16>
    %49 = vector.shape_cast %48 : vector<1x1x8x8xbf16> to vector<8x8xbf16>
    %cst_41 = arith.constant dense<0.000000e+00> : vector<8x8xf32>
    %50 = tpu.matmul %47, %49, %cst_41 {dimension_numbers = #tpu.dot_dimension_numbers<[1], [0], [0], [1], [0, 0, 1, 1], [], []>} : vector<8x8xbf16>, vector<8x8xbf16>, vector<8x8xf32> -> vector<8x8xf32>
    %cst_42 = arith.constant dense<0xFF800000> : vector<8xf32>
    %51 = vector.multi_reduction <maximumf>, %50, %cst_42 [1] : vector<8x8xf32> to vector<8xf32>
    %52 = vector.shape_cast %51 : vector<8xf32> to vector<8x1xf32>
    %53 = vector.broadcast %52 : vector<8x1xf32> to vector<8x8xf32>
    %54 = arith.subf %50, %53 : vector<8x8xf32>
    %55 = math.exp %54 : vector<8x8xf32>
    %cst_43 = arith.constant dense<0.000000e+00> : vector<8xf32>
    %56 = vector.multi_reduction <add>, %55, %cst_43 [1] : vector<8x8xf32> to vector<8xf32>
    %57 = vector.shape_cast %56 : vector<8xf32> to vector<8x1xf32>
    %58 = tpu.reciprocal %57 {approx = true} : vector<8x1xf32> -> vector<8x1xf32>
    %59 = vector.broadcast %58 : vector<8x1xf32> to vector<8x8xf32>
    %60 = arith.mulf %55, %59 : vector<8x8xf32>
    %c0_44 = arith.constant 0 : index
    %c2_45 = arith.constant 2 : index
    %c0_46 = arith.constant 0 : index
    %c0_47 = arith.constant 0 : index
    %61 = vector.load %arg3[%c0_44, %c2_45, %c0_46, %c0_47] : memref<1x4x8x8xbf16, #tpu.memory_space<vmem>>, vector<1x1x8x8xbf16>
    %62 = vector.shape_cast %61 : vector<1x1x8x8xbf16> to vector<8x8xbf16>
    %63 = arith.extf %62 : vector<8x8xbf16> to vector<8x8xf32>
    %cst_48 = arith.constant dense<0.000000e+00> : vector<8x8xf32>
    %64 = tpu.matmul %60, %63, %cst_48 {dimension_numbers = #tpu.dot_dimension_numbers<[0], [0], [1], [1], [0, 1, 1, 1], [], []>} : vector<8x8xf32>, vector<8x8xf32>, vector<8x8xf32> -> vector<8x8xf32>
    %65 = arith.truncf %64 : vector<8x8xf32> to vector<8x8xbf16>
    %c0_49 = arith.constant 0 : index
    %c0_50 = arith.constant 0 : index
    %c16 = arith.constant 16 : index
    %66 = vector.load %arg4[%c0_49, %c0_50, %c16] : memref<1x8x32xbf16, #tpu.memory_space<vmem>>, vector<1x8x8xbf16>
    %67 = vector.shape_cast %66 : vector<1x8x8xbf16> to vector<8x8xbf16>
    %68 = vector.shape_cast %65 : vector<8x8xbf16> to vector<1x8x8xbf16>
    tpu.vector_store %arg4[%c0_49, %c0_50, %c16], %68 {strides = array<i32>} : memref<1x8x32xbf16, #tpu.memory_space<vmem>>, vector<1x8x8xbf16>,
    %c0_51 = arith.constant 0 : index
    %c3 = arith.constant 3 : index
    %c0_52 = arith.constant 0 : index
    %c0_53 = arith.constant 0 : index
    %69 = vector.load %arg1[%c0_51, %c3, %c0_52, %c0_53] : memref<1x4x8x8xbf16, #tpu.memory_space<vmem>>, vector<1x1x8x8xbf16>
    %70 = vector.shape_cast %69 : vector<1x1x8x8xbf16> to vector<8x8xbf16>
    %c0_54 = arith.constant 0 : index
    %c3_55 = arith.constant 3 : index
    %c0_56 = arith.constant 0 : index
    %c0_57 = arith.constant 0 : index
    %71 = vector.load %arg2[%c0_54, %c3_55, %c0_56, %c0_57] : memref<1x4x8x8xbf16, #tpu.memory_space<vmem>>, vector<1x1x8x8xbf16>
    %72 = vector.shape_cast %71 : vector<1x1x8x8xbf16> to vector<8x8xbf16>
    %cst_58 = arith.constant dense<0.000000e+00> : vector<8x8xf32>
    %73 = tpu.matmul %70, %72, %cst_58 {dimension_numbers = #tpu.dot_dimension_numbers<[1], [0], [0], [1], [0, 0, 1, 1], [], []>} : vector<8x8xbf16>, vector<8x8xbf16>, vector<8x8xf32> -> vector<8x8xf32>
    %cst_59 = arith.constant dense<0xFF800000> : vector<8xf32>
    %74 = vector.multi_reduction <maximumf>, %73, %cst_59 [1] : vector<8x8xf32> to vector<8xf32>
    %75 = vector.shape_cast %74 : vector<8xf32> to vector<8x1xf32>
    %76 = vector.broadcast %75 : vector<8x1xf32> to vector<8x8xf32>
    %77 = arith.subf %73, %76 : vector<8x8xf32>
    %78 = math.exp %77 : vector<8x8xf32>
    %cst_60 = arith.constant dense<0.000000e+00> : vector<8xf32>
    %79 = vector.multi_reduction <add>, %78, %cst_60 [1] : vector<8x8xf32> to vector<8xf32>
    %80 = vector.shape_cast %79 : vector<8xf32> to vector<8x1xf32>
    %81 = tpu.reciprocal %80 {approx = true} : vector<8x1xf32> -> vector<8x1xf32>
    %82 = vector.broadcast %81 : vector<8x1xf32> to vector<8x8xf32>
    %83 = arith.mulf %78, %82 : vector<8x8xf32>
    %c0_61 = arith.constant 0 : index
    %c3_62 = arith.constant 3 : index
    %c0_63 = arith.constant 0 : index
    %c0_64 = arith.constant 0 : index
    %84 = vector.load %arg3[%c0_61, %c3_62, %c0_63, %c0_64] : memref<1x4x8x8xbf16, #tpu.memory_space<vmem>>, vector<1x1x8x8xbf16>
    %85 = vector.shape_cast %84 : vector<1x1x8x8xbf16> to vector<8x8xbf16>
    %86 = arith.extf %85 : vector<8x8xbf16> to vector<8x8xf32>
    %cst_65 = arith.constant dense<0.000000e+00> : vector<8x8xf32>
    %87 = tpu.matmul %83, %86, %cst_65 {dimension_numbers = #tpu.dot_dimension_numbers<[0], [0], [1], [1], [0, 1, 1, 1], [], []>} : vector<8x8xf32>, vector<8x8xf32>, vector<8x8xf32> -> vector<8x8xf32>
    %88 = arith.truncf %87 : vector<8x8xf32> to vector<8x8xbf16>
    %c0_66 = arith.constant 0 : index
    %c0_67 = arith.constant 0 : index
    %c24 = arith.constant 24 : index
    %89 = vector.load %arg4[%c0_66, %c0_67, %c24] : memref<1x8x32xbf16, #tpu.memory_space<vmem>>, vector<1x8x8xbf16>
    %90 = vector.shape_cast %89 : vector<1x8x8xbf16> to vector<8x8xbf16>
    %91 = vector.shape_cast %88 : vector<8x8xbf16> to vector<1x8x8xbf16>
    tpu.vector_store %arg4[%c0_66, %c0_67, %c24], %91 {strides = array<i32>} : memref<1x8x32xbf16, #tpu.memory_space<vmem>>, vector<1x8x8xbf16>,
    return
  }
  func.func @transform_0(%arg0: i32) -> (i32, i32, i32, i32) {
    %c0_i32 = arith.constant 0 : i32
    %c0_i32_0 = arith.constant 0 : i32
    %c0_i32_1 = arith.constant 0 : i32
    %c0_i32_2 = arith.constant 0 : i32
    return %arg0, %c0_i32, %c0_i32_0, %c0_i32_1 : i32, i32, i32, i32
  }
  func.func @transform_1(%arg0: i32) -> (i32, i32, i32, i32) {
    %c0_i32 = arith.constant 0 : i32
    %c0_i32_0 = arith.constant 0 : i32
    %c0_i32_1 = arith.constant 0 : i32
    %c0_i32_2 = arith.constant 0 : i32
    return %arg0, %c0_i32, %c0_i32_0, %c0_i32_1 : i32, i32, i32, i32
  }
  func.func @transform_2(%arg0: i32) -> (i32, i32, i32, i32) {
    %c0_i32 = arith.constant 0 : i32
    %c0_i32_0 = arith.constant 0 : i32
    %c0_i32_1 = arith.constant 0 : i32
    %c0_i32_2 = arith.constant 0 : i32
    return %arg0, %c0_i32, %c0_i32_0, %c0_i32_1 : i32, i32, i32, i32
  }
  func.func @transform_3(%arg0: i32) -> (i32, i32, i32) {
    %c0_i32 = arith.constant 0 : i32
    %c0_i32_0 = arith.constant 0 : i32
    %c0_i32_1 = arith.constant 0 : i32
    return %arg0, %c0_i32, %c0_i32_0 : i32, i32, i32
  }
}

module attributes {stable_mosaic.version = 11 : i64} {
  func.func @_linear_kernel(%arg0: i32, %arg1: i32, %arg2: i32, %arg3: memref<16x16xbf16, #tpu.memory_space<vmem>>, %arg4: memref<16x96xbf16, #tpu.memory_space<vmem>>, %arg5: memref<1x96xf32, #tpu.memory_space<vmem>>, %arg6: memref<16x96xbf16, #tpu.memory_space<vmem>>, %arg7: memref<16x96xf32, #tpu.memory_space<vmem>>) attributes {dimension_semantics = [#tpu.dimension_semantics<parallel>, #tpu.dimension_semantics<parallel>, #tpu.dimension_semantics<arbitrary>], iteration_bounds = array<i64: 1, 1, 1>, scalar_prefetch = 0 : i64, scratch_operands = 1 : i64, tpu.core_type = #tpu.core_type<tc>, window_params = [{transform_indices = @transform_0, window_bounds = array<i64: 16, 16>}, {transform_indices = @transform_1, window_bounds = array<i64: 16, 96>}, {transform_indices = @transform_2, window_bounds = array<i64: 1, 96>}, {transform_indices = @transform_3, window_bounds = array<i64: 16, 96>}]} {
    %c0_i32 = arith.constant 0 : i32
    %0 = arith.cmpi eq, %arg2, %c0_i32 : i32
    %1 = arith.extui %0 : i1 to i32
    %c0_i32_0 = arith.constant 0 : i32
    %2 = arith.cmpi ne, %1, %c0_i32_0 : i32
    scf.if %2 {
      %cst_10 = arith.constant 0.000000e+00 : f32
      %12 = vector.broadcast %cst_10 : f32 to vector<16x96xf32>
      %c0_11 = arith.constant 0 : index
      %c0_12 = arith.constant 0 : index
      %13 = vector.load %arg7[%c0_11, %c0_12] : memref<16x96xf32, #tpu.memory_space<vmem>>, vector<16x96xf32>
      tpu.vector_store %arg7[%c0_11, %c0_12], %12 {strides = array<i32>} : memref<16x96xf32, #tpu.memory_space<vmem>>, vector<16x96xf32>,
    } else {
    }
    %c0 = arith.constant 0 : index
    %c0_1 = arith.constant 0 : index
    %3 = vector.load %arg7[%c0, %c0_1] : memref<16x96xf32, #tpu.memory_space<vmem>>, vector<16x96xf32>
    %c0_2 = arith.constant 0 : index
    %c0_3 = arith.constant 0 : index
    %4 = vector.load %arg3[%c0_2, %c0_3] : memref<16x16xbf16, #tpu.memory_space<vmem>>, vector<16x16xbf16>
    %c0_4 = arith.constant 0 : index
    %c0_5 = arith.constant 0 : index
    %5 = vector.load %arg4[%c0_4, %c0_5] : memref<16x96xbf16, #tpu.memory_space<vmem>>, vector<16x96xbf16>
    %cst = arith.constant dense<0.000000e+00> : vector<16x96xf32>
    %6 = tpu.matmul %4, %5, %cst {dimension_numbers = #tpu.dot_dimension_numbers<[1], [0], [0], [1], [0, 0, 1, 1], [], []>} : vector<16x16xbf16>, vector<16x96xbf16>, vector<16x96xf32> -> vector<16x96xf32>
    %7 = arith.addf %3, %6 : vector<16x96xf32>
    %c0_6 = arith.constant 0 : index
    %c0_7 = arith.constant 0 : index
    %8 = vector.load %arg7[%c0_6, %c0_7] : memref<16x96xf32, #tpu.memory_space<vmem>>, vector<16x96xf32>
    tpu.vector_store %arg7[%c0_6, %c0_7], %7 {strides = array<i32>} : memref<16x96xf32, #tpu.memory_space<vmem>>, vector<16x96xf32>,
    %c0_i32_8 = arith.constant 0 : i32
    %9 = arith.cmpi eq, %arg2, %c0_i32_8 : i32
    %10 = arith.extui %9 : i1 to i32
    %c0_i32_9 = arith.constant 0 : i32
    %11 = arith.cmpi ne, %10, %c0_i32_9 : i32
    scf.if %11 {
      %c0_10 = arith.constant 0 : index
      %c0_11 = arith.constant 0 : index
      %12 = vector.load %arg7[%c0_10, %c0_11] : memref<16x96xf32, #tpu.memory_space<vmem>>, vector<16x96xf32>
      %c0_12 = arith.constant 0 : index
      %c0_13 = arith.constant 0 : index
      %13 = vector.load %arg5[%c0_12, %c0_13] : memref<1x96xf32, #tpu.memory_space<vmem>>, vector<1x96xf32>
      %14 = vector.broadcast %13 : vector<1x96xf32> to vector<16x96xf32>
      %15 = arith.addf %12, %14 : vector<16x96xf32>
      %16 = arith.truncf %15 : vector<16x96xf32> to vector<16x96xbf16>
      %c0_14 = arith.constant 0 : index
      %c0_15 = arith.constant 0 : index
      %17 = vector.load %arg6[%c0_14, %c0_15] : memref<16x96xbf16, #tpu.memory_space<vmem>>, vector<16x96xbf16>
      tpu.vector_store %arg6[%c0_14, %c0_15], %16 {strides = array<i32>} : memref<16x96xbf16, #tpu.memory_space<vmem>>, vector<16x96xbf16>,
    } else {
    }
    return
  }
  func.func @transform_0(%arg0: i32, %arg1: i32, %arg2: i32) -> (i32, i32) {
    %c0_i32 = arith.constant 0 : i32
    return %arg0, %arg2 : i32, i32
  }
  func.func @transform_1(%arg0: i32, %arg1: i32, %arg2: i32) -> (i32, i32) {
    %c0_i32 = arith.constant 0 : i32
    return %arg2, %arg1 : i32, i32
  }
  func.func @transform_2(%arg0: i32, %arg1: i32, %arg2: i32) -> (i32, i32) {
    %c0_i32 = arith.constant 0 : i32
    %c0_i32_0 = arith.constant 0 : i32
    return %c0_i32, %arg1 : i32, i32
  }
  func.func @transform_3(%arg0: i32, %arg1: i32, %arg2: i32) -> (i32, i32) {
    %c0_i32 = arith.constant 0 : i32
    return %arg0, %arg1 : i32, i32
  }
}

module attributes {stable_mosaic.version = 11 : i64} {
  func.func @_linear_kernel(%arg0: i32, %arg1: i32, %arg2: i32, %arg3: memref<16x32xbf16, #tpu.memory_space<vmem>>, %arg4: memref<32x16xbf16, #tpu.memory_space<vmem>>, %arg5: memref<1x16xf32, #tpu.memory_space<vmem>>, %arg6: memref<16x16xf32, #tpu.memory_space<vmem>>, %arg7: memref<16x16xf32, #tpu.memory_space<vmem>>) attributes {dimension_semantics = [#tpu.dimension_semantics<parallel>, #tpu.dimension_semantics<parallel>, #tpu.dimension_semantics<arbitrary>], iteration_bounds = array<i64: 1, 1, 1>, scalar_prefetch = 0 : i64, scratch_operands = 1 : i64, tpu.core_type = #tpu.core_type<tc>, window_params = [{transform_indices = @transform_0, window_bounds = array<i64: 16, 32>}, {transform_indices = @transform_1, window_bounds = array<i64: 32, 16>}, {transform_indices = @transform_2, window_bounds = array<i64: 1, 16>}, {transform_indices = @transform_3, window_bounds = array<i64: 16, 16>}]} {
    %c0_i32 = arith.constant 0 : i32
    %0 = arith.cmpi eq, %arg2, %c0_i32 : i32
    %1 = arith.extui %0 : i1 to i32
    %c0_i32_0 = arith.constant 0 : i32
    %2 = arith.cmpi ne, %1, %c0_i32_0 : i32
    scf.if %2 {
      %cst_10 = arith.constant 0.000000e+00 : f32
      %12 = vector.broadcast %cst_10 : f32 to vector<16x16xf32>
      %c0_11 = arith.constant 0 : index
      %c0_12 = arith.constant 0 : index
      %13 = vector.load %arg7[%c0_11, %c0_12] : memref<16x16xf32, #tpu.memory_space<vmem>>, vector<16x16xf32>
      tpu.vector_store %arg7[%c0_11, %c0_12], %12 {strides = array<i32>} : memref<16x16xf32, #tpu.memory_space<vmem>>, vector<16x16xf32>,
    } else {
    }
    %c0 = arith.constant 0 : index
    %c0_1 = arith.constant 0 : index
    %3 = vector.load %arg7[%c0, %c0_1] : memref<16x16xf32, #tpu.memory_space<vmem>>, vector<16x16xf32>
    %c0_2 = arith.constant 0 : index
    %c0_3 = arith.constant 0 : index
    %4 = vector.load %arg3[%c0_2, %c0_3] : memref<16x32xbf16, #tpu.memory_space<vmem>>, vector<16x32xbf16>
    %c0_4 = arith.constant 0 : index
    %c0_5 = arith.constant 0 : index
    %5 = vector.load %arg4[%c0_4, %c0_5] : memref<32x16xbf16, #tpu.memory_space<vmem>>, vector<32x16xbf16>
    %cst = arith.constant dense<0.000000e+00> : vector<16x16xf32>
    %6 = tpu.matmul %4, %5, %cst {dimension_numbers = #tpu.dot_dimension_numbers<[1], [0], [0], [1], [0, 0, 1, 1], [], []>} : vector<16x32xbf16>, vector<32x16xbf16>, vector<16x16xf32> -> vector<16x16xf32>
    %7 = arith.addf %3, %6 : vector<16x16xf32>
    %c0_6 = arith.constant 0 : index
    %c0_7 = arith.constant 0 : index
    %8 = vector.load %arg7[%c0_6, %c0_7] : memref<16x16xf32, #tpu.memory_space<vmem>>, vector<16x16xf32>
    tpu.vector_store %arg7[%c0_6, %c0_7], %7 {strides = array<i32>} : memref<16x16xf32, #tpu.memory_space<vmem>>, vector<16x16xf32>,
    %c0_i32_8 = arith.constant 0 : i32
    %9 = arith.cmpi eq, %arg2, %c0_i32_8 : i32
    %10 = arith.extui %9 : i1 to i32
    %c0_i32_9 = arith.constant 0 : i32
    %11 = arith.cmpi ne, %10, %c0_i32_9 : i32
    scf.if %11 {
      %c0_10 = arith.constant 0 : index
      %c0_11 = arith.constant 0 : index
      %12 = vector.load %arg7[%c0_10, %c0_11] : memref<16x16xf32, #tpu.memory_space<vmem>>, vector<16x16xf32>
      %c0_12 = arith.constant 0 : index
      %c0_13 = arith.constant 0 : index
      %13 = vector.load %arg5[%c0_12, %c0_13] : memref<1x16xf32, #tpu.memory_space<vmem>>, vector<1x16xf32>
      %14 = vector.broadcast %13 : vector<1x16xf32> to vector<16x16xf32>
      %15 = arith.addf %12, %14 : vector<16x16xf32>
      %c0_14 = arith.constant 0 : index
      %c0_15 = arith.constant 0 : index
      %16 = vector.load %arg6[%c0_14, %c0_15] : memref<16x16xf32, #tpu.memory_space<vmem>>, vector<16x16xf32>
      tpu.vector_store %arg6[%c0_14, %c0_15], %15 {strides = array<i32>} : memref<16x16xf32, #tpu.memory_space<vmem>>, vector<16x16xf32>,
    } else {
    }
    return
  }
  func.func @transform_0(%arg0: i32, %arg1: i32, %arg2: i32) -> (i32, i32) {
    %c0_i32 = arith.constant 0 : i32
    return %arg0, %arg2 : i32, i32
  }
  func.func @transform_1(%arg0: i32, %arg1: i32, %arg2: i32) -> (i32, i32) {
    %c0_i32 = arith.constant 0 : i32
    return %arg2, %arg1 : i32, i32
  }
  func.func @transform_2(%arg0: i32, %arg1: i32, %arg2: i32) -> (i32, i32) {
    %c0_i32 = arith.constant 0 : i32
    %c0_i32_0 = arith.constant 0 : i32
    return %c0_i32, %arg1 : i32, i32
  }
  func.func @transform_3(%arg0: i32, %arg1: i32, %arg2: i32) -> (i32, i32) {
    %c0_i32 = arith.constant 0 : i32
    return %arg0, %arg1 : i32, i32
  }
}

</mosaic_0001>

<llo_original>
// kernel: multi_head_attention_forward.3
$region0: #{multi_head_attention_forward.3}
  #allocation0 [shape = 'u32[]', space=smem, size = 0x4, offset = 0x4, fixed_abs, tag = 'smem constant byte address 0x4 - core index']
  #allocation1 [shape = 'u32[72,128]{1,0:T(1,128)}', space=vmem, size = 0x9000, scoped, tag = 'internal scratch']
  #allocation2 [shape = 'f32[16,96]{1,0:T(8,128)}', space=vmem, size = 0x2000, scoped, tag = 'scratch operand']
  %s0 = inlined_call_operand.vmem [shape: bf16[16,16], index: 0, kind: input, shape index: {}]
  %s1 = inlined_call_operand.vmem [shape: bf16[16,96], index: 1, kind: input, shape index: {}]
  %s2 = inlined_call_operand.vmem [shape: f32[1,96], index: 2, kind: input, shape index: {}]
  %s3 = inlined_call_operand.vmem [shape: bf16[16,96], index: 3, kind: output, shape index: {}]
  %s4 = sld [smem:[#allocation0]]
  $region30: #{multi_head_attention_forward.3} parent=0
    _
  %s6 = ssub.s32 1, %s4
  %s7 = scalar_select 0, %s6, %s4
  // Predicated region
  $region2: #{multi_head_attention_forward.3} parent=0 // pred_check
    _
  $region3: #{multi_head_attention_forward.3} parent=0 // pred_check_branch
    %9 = sbr.rel (0) target = $region5
  $region4: #{multi_head_attention_forward.3} parent=0 // pred_region
    _
  $region5: #{multi_head_attention_forward.3} parent=0 // pred_fallthru
    _
  // Predicated region
  $region6: #{multi_head_attention_forward.3} parent=0 // pred_check
    _
  $region7: #{multi_head_attention_forward.3} parent=0 // pred_check_branch
    %11 = sbr.rel (0) target = $region9
  $region8: #{multi_head_attention_forward.3} parent=0 // pred_region
    _
  $region9: #{multi_head_attention_forward.3} parent=0 // pred_fallthru
    _
  // Predicated region
  $region10: #{multi_head_attention_forward.3} parent=0 // pred_check
    _
  $region11: #{multi_head_attention_forward.3} parent=0 // pred_check_branch
    %13 = sbr.rel (0) target = $region13
  $region12: #{multi_head_attention_forward.3} parent=0 // pred_region
    _
  $region13: #{multi_head_attention_forward.3} parent=0 // pred_fallthru
    _
  %p15 = scmp.eq.s32.totalorder 0, 0
  // Predicated region
  $region14: #{multi_head_attention_forward.3} parent=0 // pred_check
    %p16 = pneg %p15
  $region15: #{multi_head_attention_forward.3} parent=0 // pred_check_branch
    %18 = sbr.rel (%p16) target = $region17
  $region16: #{multi_head_attention_forward.3} parent=0 // pred_region
    %vm19 = vcmask 785408
    %20 = vst.msk [vmem:[#allocation2] sm:$0xff] %vm19, 0.0
    %21 = vst.msk [vmem:[#allocation2 + $0x8] sm:$0xff] %vm19, 0.0
  $region17: #{multi_head_attention_forward.3} parent=0 // pred_fallthru
    _
  %v22 = vld [vmem:[#allocation2] sm:$0xff]
  %v23 = vld [vmem:[#allocation2 + $0x8] sm:$0xff]
  %v24 = vld [vmem:[%s0] sm:$0xf]
  %v25 = vld [vmem:[%s0 + $0x4] sm:$0xf]
  %v26 = vld [vmem:[%s1] sm:$0xf]
  %v27 = vld [vmem:[%s1 + $0x4] sm:$0xf]
  %v30 = vunpack.c.l.b16 %v24
  %v31 = vunpack.c.l.b16 %v25
  %v32 = vpack.c.b16 %v31, %v30
  %v35 = vunpack.c.l.b16 %v26
  %v36 = vunpack.c.l.b16 %v27
  %v37 = vpack.c.b16 %v36, %v35
  %vm39 = vcmask 130048
  %v41 = vsel %vm39, %v32, 0
  %43 = vmatpush.bf16.msra.mxu0 0
  %44 = vmatpush.bf16.msra.mxu0 0
  %45 = vmatpush.bf16.msra.mxu0 0
  %46 = vmatpush.bf16.msra.mxu0 0
  %47 = vmatpush.bf16.msra.mxu0 0
  %48 = vmatpush.bf16.msra.mxu0 0
  %49 = vmatpush.bf16.msra.mxu0 0
  %50 = vmatpush.bf16.msra.mxu0 %v37
  %51 = vmatmul.bf16.gmra.mxu0 %v41
  %v52 = vpop.f32.mrf.mxu0
  %v53 = vadd.f32 0.0, %v52
  %v54 = vpop.f32.mrf.mxu0
  %v55 = vadd.f32 0.0, %v54
  %56 = vdwg.mxu0
  %v57 = vadd.f32 %v22, %v53
  %v58 = vadd.f32 %v23, %v55
  %vm59 = vcmask 785408
  %60 = vst.msk [vmem:[#allocation2] sm:$0xff] %vm59, %v57
  %61 = vst.msk [vmem:[#allocation2 + $0x8] sm:$0xff] %vm59, %v58
  // Predicated region
  $region18: #{multi_head_attention_forward.3} parent=0 // pred_check
    %p62 = pneg %p15
  $region19: #{multi_head_attention_forward.3} parent=0 // pred_check_branch
    %64 = sbr.rel (%p62) target = $region21
  $region20: #{multi_head_attention_forward.3} parent=0 // pred_region
    %v65 = vld [vmem:[#allocation2] sm:$0xff]
    %v66 = vld [vmem:[#allocation2 + $0x8] sm:$0xff]
    %v67 = vld [vmem:[%s2] sm:$0x1]
    %v69 = vperm.slane %v67, 0
    %v71 = vadd.f32 %v65, %v69
    %v72 = vadd.f32 %v66, %v69
    %v73 = vpack.c.bf16 %v71, %v71
    %v74 = vpack.c.bf16 %v72, %v72
    %vm75 = vcmask 781312
    %76 = vst.msk [vmem:[%s3] sm:$0xf] %vm75, %v73
    %77 = vst.msk [vmem:[%s3 + $0x4] sm:$0xf] %vm75, %v74
  $region21: #{multi_head_attention_forward.3} parent=0 // pred_fallthru
    _
  // Predicated region
  $region22: #{multi_head_attention_forward.3} parent=0 // pred_check
    _
  $region23: #{multi_head_attention_forward.3} parent=0 // pred_check_branch
    %79 = sbr.rel (0) target = $region25
  $region24: #{multi_head_attention_forward.3} parent=0 // pred_region
    _
  $region25: #{multi_head_attention_forward.3} parent=0 // pred_fallthru
    _
  // Predicated region
  $region26: #{multi_head_attention_forward.3} parent=0 // pred_check
    _
  $region27: #{multi_head_attention_forward.3} parent=0 // pred_check_branch
    %81 = sbr.rel (0) target = $region29
  $region28: #{multi_head_attention_forward.3} parent=0 // pred_region
    _
  $region29: #{multi_head_attention_forward.3} parent=0 // pred_fallthru
    _

// kernel: multi_head_attention_forward.5
$region0: #{multi_head_attention_forward.5}
  #allocation0 [shape = 'u32[]', space=smem, size = 0x4, offset = 0x4, fixed_abs, tag = 'smem constant byte address 0x4 - core index']
  #allocation1 [shape = 'u32[72,128]{1,0:T(1,128)}', space=vmem, size = 0x9000, scoped, tag = 'internal scratch']
  #allocation2 [shape = 'f32[16,16]{1,0:T(8,128)}', space=vmem, size = 0x2000, scoped, tag = 'scratch operand']
  %s0 = inlined_call_operand.vmem [shape: bf16[16,32], index: 0, kind: input, shape index: {}]
  %s1 = inlined_call_operand.vmem [shape: bf16[32,16], index: 1, kind: input, shape index: {}]
  %s2 = inlined_call_operand.vmem [shape: f32[1,16], index: 2, kind: input, shape index: {}]
  %s3 = inlined_call_operand.hbm [shape: f32[16,16], index: 3, kind: output, shape index: {}]
  %s4 = sld [smem:[#allocation0]]
  $region30: #{multi_head_attention_forward.5} parent=0
    _
  %s6 = ssub.s32 1, %s4
  %s7 = scalar_select 0, %s6, %s4
  $region1: #{multi_head_attention_forward.5} parent=0
    #allocation3 [shape = 'u8[8192]{0}', space=vmem, size = 0x2000, scoped, tag = 'output window, operand 0, single buffered']
    #allocation4 [shape = 's32[1]{0}', space=sflag, size = 0x4, scoped, tag = 'scoped memory for multi_head_attention_forward.5']
    %8 = vsyncpa [#allocation4], 0
    // Predicated region
    $region2: #{multi_head_attention_forward.5} parent=1 // pred_check
      _
    $region3: #{multi_head_attention_forward.5} parent=1 // pred_check_branch
      %10 = sbr.rel (0) target = $region5
    $region4: #{multi_head_attention_forward.5} parent=1 // pred_region
      _
    $region5: #{multi_head_attention_forward.5} parent=1 // pred_fallthru
      _
    // Predicated region
    $region6: #{multi_head_attention_forward.5} parent=1 // pred_check
      _
    $region7: #{multi_head_attention_forward.5} parent=1 // pred_check_branch
      %12 = sbr.rel (0) target = $region9
    $region8: #{multi_head_attention_forward.5} parent=1 // pred_region
      _
    $region9: #{multi_head_attention_forward.5} parent=1 // pred_fallthru
      _
    // Predicated region
    $region10: #{multi_head_attention_forward.5} parent=1 // pred_check
      _
    $region11: #{multi_head_attention_forward.5} parent=1 // pred_check_branch
      %14 = sbr.rel (0) target = $region13
    $region12: #{multi_head_attention_forward.5} parent=1 // pred_region
      _
    $region13: #{multi_head_attention_forward.5} parent=1 // pred_fallthru
      _
    %p16 = scmp.eq.s32.totalorder 0, 0
    // Predicated region
    $region14: #{multi_head_attention_forward.5} parent=1 // pred_check
      %p17 = pneg %p16
    $region15: #{multi_head_attention_forward.5} parent=1 // pred_check_branch
      %19 = sbr.rel (%p17) target = $region17
    $region16: #{multi_head_attention_forward.5} parent=1 // pred_region
      %vm20 = vcmask 130048
      %21 = vst.msk [vmem:[#allocation2] sm:$0xff] %vm20, 0.0
      %22 = vst.msk [vmem:[#allocation2 + $0x8] sm:$0xff] %vm20, 0.0
    $region17: #{multi_head_attention_forward.5} parent=1 // pred_fallthru
      _
    %v23 = vld [vmem:[#allocation2] sm:$0xff]
    %v24 = vld [vmem:[#allocation2 + $0x8] sm:$0xff]
    %v25 = vld [vmem:[%s0] sm:$0xf]
    %v26 = vld [vmem:[%s0 + $0x4] sm:$0xf]
    %v27 = vld [vmem:[%s1] sm:$0xf]
    %v28 = vld [vmem:[%s1 + $0x4] sm:$0xf]
    %v29 = vld [vmem:[%s1 + $0x8] sm:$0xf]
    %v30 = vld [vmem:[%s1 + $0xc] sm:$0xf]
    %v33 = vunpack.c.l.b16 %v25
    %v34 = vunpack.c.l.b16 %v26
    %v35 = vpack.c.b16 %v34, %v33
    %v40 = vunpack.c.l.b16 %v27
    %v41 = vunpack.c.l.b16 %v28
    %v42 = vunpack.c.l.b16 %v29
    %v43 = vunpack.c.l.b16 %v30
    %v44 = vpack.c.b16 %v41, %v40
    %v45 = vpack.c.b16 %v43, %v42
    %vm48 = vcmask 261120
    %v50 = vsel %vm48, %v35, 0
    %52 = vmatpush.bf16.msra.mxu0 0
    %53 = vmatpush.bf16.msra.mxu0 0
    %54 = vmatpush.bf16.msra.mxu0 0
    %55 = vmatpush.bf16.msra.mxu0 0
    %56 = vmatpush.bf16.msra.mxu0 0
    %57 = vmatpush.bf16.msra.mxu0 0
    %58 = vmatpush.bf16.msra.mxu0 %v45
    %59 = vmatpush.bf16.msra.mxu0 %v44
    %60 = vmatmul.bf16.gmra.mxu0 %v50
    %v61 = vpop.f32.mrf.mxu0
    %v62 = vadd.f32 0.0, %v61
    %v63 = vpop.f32.mrf.mxu0
    %v64 = vadd.f32 0.0, %v63
    %65 = vdwg.mxu0
    %v66 = vadd.f32 %v23, %v62
    %v67 = vadd.f32 %v24, %v64
    %vm68 = vcmask 130048
    %69 = vst.msk [vmem:[#allocation2] sm:$0xff] %vm68, %v66
    %70 = vst.msk [vmem:[#allocation2 + $0x8] sm:$0xff] %vm68, %v67
    // Predicated region
    $region18: #{multi_head_attention_forward.5} parent=1 // pred_check
      %p71 = pneg %p16
    $region19: #{multi_head_attention_forward.5} parent=1 // pred_check_branch
      %73 = sbr.rel (%p71) target = $region21
    $region20: #{multi_head_attention_forward.5} parent=1 // pred_region
      %v74 = vld [vmem:[#allocation2] sm:$0xff]
      %v75 = vld [vmem:[#allocation2 + $0x8] sm:$0xff]
      %v76 = vld [vmem:[%s2] sm:$0x1]
      %v78 = vperm.slane %v76, 0
      %v80 = vadd.f32 %v74, %v78
      %v81 = vadd.f32 %v75, %v78
      %82 = vst.msk [vmem:[#allocation3] sm:$0xff] %vm68, %v80
      %83 = vst.msk [vmem:[#allocation3 + $0x8] sm:$0xff] %vm68, %v81
    $region21: #{multi_head_attention_forward.5} parent=1 // pred_fallthru
      _
    // Predicated region
    $region22: #{multi_head_attention_forward.5} parent=1 // pred_check
      _
    $region23: #{multi_head_attention_forward.5} parent=1 // pred_check_branch
      %85 = sbr.rel (0) target = $region25
    $region24: #{multi_head_attention_forward.5} parent=1 // pred_region
      %87 = vsyncadd [#allocation4], 0
      %s88 = sshll.u32 [#allocation3], 4
      %s89 = int_to_ptr.vmem [resolvable:$true] %s88
      %s90 = sshll.u32 %s3, 4
      %s91 = int_to_ptr.hbm [resolvable:$true] %s90
      %96 = dma.vmem_to_hbm [thread:$0]  %s89, 256, %s91, [#allocation4], 128, 128, 8
    $region25: #{multi_head_attention_forward.5} parent=1 // pred_fallthru
      _
    // Predicated region
    $region26: #{multi_head_attention_forward.5} parent=1 // pred_check
      _
    $region27: #{multi_head_attention_forward.5} parent=1 // pred_check_branch
      %98 = sbr.rel (0) target = $region29
    $region28: #{multi_head_attention_forward.5} parent=1 // pred_region
      %100 = dma.done [#allocation4], 256
    $region29: #{multi_head_attention_forward.5} parent=1 // pred_fallthru
      _
    %101 = vsyncpa [#allocation4], 1

// kernel: multi_head_attention_forward.4
$region0: #{multi_head_attention_forward.4}
  #allocation0 [shape = 'u32[]', space=smem, size = 0x4, offset = 0x4, fixed_abs, tag = 'smem constant byte address 0x4 - core index']
  #allocation1 [shape = 'u32[72,128]{1,0:T(1,128)}', space=vmem, size = 0x9000, scoped, tag = 'internal scratch']
  %s0 = inlined_call_operand.vmem [shape: bf16[2,4,8,8], index: 0, kind: input, shape index: {}]
  %s1 = inlined_call_operand.vmem [shape: bf16[2,4,8,8], index: 1, kind: input, shape index: {}]
  %s2 = inlined_call_operand.vmem [shape: bf16[2,4,8,8], index: 2, kind: input, shape index: {}]
  %s3 = inlined_call_operand.vmem [shape: bf16[2,8,32], index: 3, kind: output, shape index: {}]
  %s4 = sld [smem:[#allocation0]]
  $region45: #{multi_head_attention_forward.4} parent=0
    _
  %s6 = ssub.s32 1, %s4
  %s7 = scalar_select 0, %s6, %s4
  loop: start=0, step=1, limit=4
  $region2: #{multi_head_attention_forward.4} parent=0 // loop_pre_header
    _
  $region3: #{multi_head_attention_forward.4} parent=0 // loop_header
    %s9 = sphi 0, %s13
    %p10 = scmp.ge.s32.totalorder %s9, 4
    %s19 = sphi 0, %s21
    %s22 = sphi 0, %s19
    %s23 = sphi 0, %s22
    %s39 = sphi 0, %s23
    %s45 = sphi 0, %s47
    %s48 = sphi 0, %s45
    %s49 = sphi 0, %s48
    %s65 = sphi 0, %s49
    %s71 = sphi 0, %s73
    %s74 = sphi 0, %s71
    %s75 = sphi 0, %s74
    %s91 = sphi 0, %s75
    %s97 = sphi 0, %s99
    %s100 = sphi 0, %s97
    %s101 = sphi 0, %s100
    %s117 = sphi 0, %s101
  $region4: #{multi_head_attention_forward.4} parent=0 // loop_header_branch
    %12 = sbr.rel (%p10) target = $region8
  $region5: #{multi_head_attention_forward.4} parent=0 // loop_body
    %s14 = ssub.s32 %s9, 1
    %s15 = ssub.s32 %s9, 2
    %s16 = sadd.s32 %s9, 1
    %s17 = ssub.s32 %s9, %s16
    %p18 = scmp.eq.s32.totalorder %s17, 0
    %s20 = sadd.s32 %s19, 1
    %s21 = scalar_select %p18, %s19, %s20
    %p24 = pneg %p18
    %p25 = scmp.eq.s32.totalorder %s9, 1
    %p26 = por %p24, %p25
    %p27 = scmp.ne.s32.totalorder %s19, %s22
    %p28 = scmp.eq.s32.totalorder %s9, 0
    %p29 = por %p27, %p28
    %p30 = scmp.ne.s32.totalorder %s19, %s22
    %p31 = scmp.eq.s32.totalorder %s14, 1
    %p32 = por %p30, %p31
    %p33 = scmp.ne.s32.totalorder %s22, %s23
    %p34 = scmp.eq.s32.totalorder %s14, 0
    %p35 = por %p33, %p34
    %p36 = scmp.ne.s32.totalorder %s22, %s23
    %p37 = scmp.eq.s32.totalorder %s15, 1
    %p38 = por %p36, %p37
    %p40 = scmp.ne.s32.totalorder %s23, %s39
    %p41 = scmp.eq.s32.totalorder %s15, 0
    %p42 = por %p40, %p41
    %s43 = ssub.s32 %s9, %s16
    %p44 = scmp.eq.s32.totalorder %s43, 0
    %s46 = sadd.s32 %s45, 1
    %s47 = scalar_select %p44, %s45, %s46
    %p50 = pneg %p44
    %p51 = scmp.eq.s32.totalorder %s9, 1
    %p52 = por %p50, %p51
    %p53 = scmp.ne.s32.totalorder %s45, %s48
    %p54 = scmp.eq.s32.totalorder %s9, 0
    %p55 = por %p53, %p54
    %p56 = scmp.ne.s32.totalorder %s45, %s48
    %p57 = scmp.eq.s32.totalorder %s14, 1
    %p58 = por %p56, %p57
    %p59 = scmp.ne.s32.totalorder %s48, %s49
    %p60 = scmp.eq.s32.totalorder %s14, 0
    %p61 = por %p59, %p60
    %p62 = scmp.ne.s32.totalorder %s48, %s49
    %p63 = scmp.eq.s32.totalorder %s15, 1
    %p64 = por %p62, %p63
    %p66 = scmp.ne.s32.totalorder %s49, %s65
    %p67 = scmp.eq.s32.totalorder %s15, 0
    %p68 = por %p66, %p67
    %s69 = ssub.s32 %s9, %s16
    %p70 = scmp.eq.s32.totalorder %s69, 0
    %s72 = sadd.s32 %s71, 1
    %s73 = scalar_select %p70, %s71, %s72
    %p76 = pneg %p70
    %p77 = scmp.eq.s32.totalorder %s9, 1
    %p78 = por %p76, %p77
    %p79 = scmp.ne.s32.totalorder %s71, %s74
    %p80 = scmp.eq.s32.totalorder %s9, 0
    %p81 = por %p79, %p80
    %p82 = scmp.ne.s32.totalorder %s71, %s74
    %p83 = scmp.eq.s32.totalorder %s14, 1
    %p84 = por %p82, %p83
    %p85 = scmp.ne.s32.totalorder %s74, %s75
    %p86 = scmp.eq.s32.totalorder %s14, 0
    %p87 = por %p85, %p86
    %p88 = scmp.ne.s32.totalorder %s74, %s75
    %p89 = scmp.eq.s32.totalorder %s15, 1
    %p90 = por %p88, %p89
    %p92 = scmp.ne.s32.totalorder %s75, %s91
    %p93 = scmp.eq.s32.totalorder %s15, 0
    %p94 = por %p92, %p93
    %s95 = ssub.s32 %s9, %s16
    %p96 = scmp.eq.s32.totalorder %s95, 0
    %s98 = sadd.s32 %s97, 1
    %s99 = scalar_select %p96, %s97, %s98
    %p102 = pneg %p96
    %p103 = scmp.eq.s32.totalorder %s9, 1
    %p104 = por %p102, %p103
    %p105 = scmp.ne.s32.totalorder %s97, %s100
    %p106 = scmp.eq.s32.totalorder %s9, 0
    %p107 = por %p105, %p106
    %p108 = scmp.ne.s32.totalorder %s97, %s100
    %p109 = scmp.eq.s32.totalorder %s14, 1
    %p110 = por %p108, %p109
    %p111 = scmp.ne.s32.totalorder %s100, %s101
    %p112 = scmp.eq.s32.totalorder %s14, 0
    %p113 = por %p111, %p112
    %p114 = scmp.ne.s32.totalorder %s100, %s101
    %p115 = scmp.eq.s32.totalorder %s15, 1
    %p116 = por %p114, %p115
    %p118 = scmp.ne.s32.totalorder %s101, %s117
    %p119 = scmp.eq.s32.totalorder %s15, 0
    %p120 = por %p118, %p119
    %p121 = scmp.le.s32.totalorder 1, %s9
    %p122 = scmp.lt.s32.totalorder %s9, 3
    %p123 = pnand %p121, %p122
    %p124 = pneg %p123
    // Predicated region
    $region9: #{multi_head_attention_forward.4} parent=5 // pred_check
      _
    $region10: #{multi_head_attention_forward.4} parent=5 // pred_check_branch
      %126 = sbr.rel (%p123) target = $region12
    $region11: #{multi_head_attention_forward.4} parent=5 // pred_region
      %s127 = ssub.s32 %s9, 1
    $region12: #{multi_head_attention_forward.4} parent=5 // pred_fallthru
      _
    %p128 = scmp.lt.s32.totalorder %s9, 2
    // Predicated region
    $region13: #{multi_head_attention_forward.4} parent=5 // pred_check
      %p129 = pneg %p128
    $region14: #{multi_head_attention_forward.4} parent=5 // pred_check_branch
      %131 = sbr.rel (%p129) target = $region16
    $region15: #{multi_head_attention_forward.4} parent=5 // pred_region
      // Predicated region
      $region17: #{multi_head_attention_forward.4} parent=15 // pred_check
        %p132 = pneg %p29
      $region18: #{multi_head_attention_forward.4} parent=15 // pred_check_branch
        %134 = sbr.rel (%p132) target = $region20
      $region19: #{multi_head_attention_forward.4} parent=15 // pred_region
        %p135 = scmp.lt.s32.totalorder %s9, 1
        %s136 = scalar_select %p135, %s9, 1
        %s137 = smul.addr %s136, 4
        %s138 = smul.addr %s137, 4
        %s139 = scalar_lea.vmem %s0, %s138
      $region20: #{multi_head_attention_forward.4} parent=15 // pred_fallthru
        _
      // Predicated region
      $region21: #{multi_head_attention_forward.4} parent=15 // pred_check
        %p140 = pneg %p55
      $region22: #{multi_head_attention_forward.4} parent=15 // pred_check_branch
        %142 = sbr.rel (%p140) target = $region24
      $region23: #{multi_head_attention_forward.4} parent=15 // pred_region
        %p143 = scmp.lt.s32.totalorder %s9, 1
        %s144 = scalar_select %p143, %s9, 1
        %s145 = smul.addr %s144, 4
        %s146 = smul.addr %s145, 4
        %s147 = scalar_lea.vmem %s1, %s146
      $region24: #{multi_head_attention_forward.4} parent=15 // pred_fallthru
        _
      // Predicated region
      $region25: #{multi_head_attention_forward.4} parent=15 // pred_check
        %p148 = pneg %p81
      $region26: #{multi_head_attention_forward.4} parent=15 // pred_check_branch
        %150 = sbr.rel (%p148) target = $region28
      $region27: #{multi_head_attention_forward.4} parent=15 // pred_region
        %p151 = scmp.lt.s32.totalorder %s9, 1
        %s152 = scalar_select %p151, %s9, 1
        %s153 = smul.addr %s152, 4
        %s154 = smul.addr %s153, 4
        %s155 = scalar_lea.vmem %s2, %s154
      $region28: #{multi_head_attention_forward.4} parent=15 // pred_fallthru
        _
    $region16: #{multi_head_attention_forward.4} parent=5 // pred_fallthru
      _
    %p156 = scmp.le.s32.totalorder 1, %s9
    %p157 = scmp.lt.s32.totalorder %s9, 3
    %p158 = pnand %p156, %p157
    %p159 = pneg %p158
    // Predicated region
    $region29: #{multi_head_attention_forward.4} parent=5 // pred_check
      _
    $region30: #{multi_head_attention_forward.4} parent=5 // pred_check_branch
      %161 = sbr.rel (%p158) target = $region32
    $region31: #{multi_head_attention_forward.4} parent=5 // pred_region
      %s162 = ssub.s32 %s9, 1
      %p163 = scmp.lt.s32.totalorder %s14, 1
      %s164 = scalar_select %p163, %s14, 1
      %s165 = smul.addr %s164, 4
      %s166 = smul.addr %s165, 4
      %s167 = scalar_lea.vmem %s0, %s166
      %p168 = pneg %p35
      %p169 = pneg %p32
      %p170 = scmp.lt.s32.totalorder %s14, 1
      %s171 = scalar_select %p170, %s14, 1
      %s172 = smul.addr %s171, 4
      %s173 = smul.addr %s172, 4
      %s174 = scalar_lea.vmem %s1, %s173
      %p175 = pneg %p61
      %p176 = pneg %p58
      %p177 = scmp.lt.s32.totalorder %s14, 1
      %s178 = scalar_select %p177, %s14, 1
      %s179 = smul.addr %s178, 4
      %s180 = smul.addr %s179, 4
      %s181 = scalar_lea.vmem %s2, %s180
      %p182 = pneg %p87
      %p183 = pneg %p84
      %p184 = pneg %p113
      %p185 = pneg %p110
      %p186 = scmp.lt.s32.totalorder %s14, 1
      %s187 = scalar_select %p186, %s14, 1
      %s188 = smul.addr %s187, 4
      %s189 = scalar_lea.vmem %s3, %s188
      %p190 = scmp.lt.s32.totalorder %s14, 1
      %s191 = scalar_select %p190, %s14, 1
      %s192 = smul.addr %s191, 4
      %s193 = smul.addr %s192, 4
      %s194 = scalar_lea.vmem %s0, %s193
      %p195 = scmp.lt.s32.totalorder %s14, 1
      %s196 = scalar_select %p195, %s14, 1
      %s197 = smul.addr %s196, 4
      %s198 = smul.addr %s197, 4
      %s199 = scalar_lea.vmem %s1, %s198
      %p200 = scmp.lt.s32.totalorder %s14, 1
      %s201 = scalar_select %p200, %s14, 1
      %s202 = smul.addr %s201, 4
      %s203 = smul.addr %s202, 4
      %s204 = scalar_lea.vmem %s2, %s203
      %p205 = scmp.lt.s32.totalorder %s14, 1
      %s206 = scalar_select %p205, %s14, 1
      %s207 = smul.addr %s206, 4
      %s208 = scalar_lea.vmem %s3, %s207
      %v210 = vld [vmem:[%s194] sm:$0xf]
      %v211 = vld [vmem:[%s199] sm:$0xf]
      %vm212 = vcmask 64512
      %v214 = vsel %vm212, %v210, 0
      %vm216 = vcmask 1043456
      %v218 = vsel %vm216, %v211, 0
      %220 = vmatpush.bf16.msra.mxu0 0
      %221 = vmatpush.bf16.msra.mxu0 0
      %222 = vmatpush.bf16.msra.mxu0 0
      %223 = vmatpush.bf16.msra.mxu0 0
      %224 = vmatpush.bf16.msra.mxu0 0
      %225 = vmatpush.bf16.msra.mxu0 0
      %226 = vmatpush.bf16.msra.mxu0 0
      %227 = vmatpush.bf16.msra.mxu0 %v218
      %228 = vmatmul.bf16.gmra.mxu0 %v214
      %v229 = vpop.f32.mrf.mxu0
      %v230 = vadd.f32 0.0, %v229
      %v231 = vpop.f32.mrf.mxu0
      %232 = vdwg.mxu0
      %v233 = vsel %vm212, %v230, -inf
      %234 = vmax.xlane.f32.xlu0 %v233
      %v235 = vpop.xlane.xlu0 %234
      %v236 = vsub.f32 %v230, %v235
      %v237 = vmul.f32 %v236, 1.442695
      %v238 = vpow.pop %v237
      %v239 = vsel %vm212, %v238, 0.0
      %240 = vadd.xlane.f32.xlu0 %v239
      %v241 = vpop.xlane.xlu0 %240
      %v242 = vrcp.pop %v241
      %v243 = vmul.f32 %v238, %v242
      %v244 = vld [vmem:[%s204] sm:$0xf]
      %v245 = vunpack.c.l.bf16 %v244
      %246 = vxpose.xlu0.b32.start [1/16] %v243, 128
      %247 = vxpose.xlu0.b32.cont [2/16] 0.0, 128
      %248 = vxpose.xlu0.b32.cont [3/16] 0.0, 128
      %249 = vxpose.xlu0.b32.cont [4/16] 0.0, 128
      %250 = vxpose.xlu0.b32.cont [5/16] 0.0, 128
      %251 = vxpose.xlu0.b32.cont [6/16] 0.0, 128
      %252 = vxpose.xlu0.b32.cont [7/16] 0.0, 128
      %253 = vxpose.xlu0.b32.cont [8/16] 0.0, 128
      %254 = vxpose.xlu0.b32.cont [9/16] 0.0, 128
      %255 = vxpose.xlu0.b32.cont [10/16] 0.0, 128
      %256 = vxpose.xlu0.b32.cont [11/16] 0.0, 128
      %257 = vxpose.xlu0.b32.cont [12/16] 0.0, 128
      %258 = vxpose.xlu0.b32.cont [13/16] 0.0, 128
      %259 = vxpose.xlu0.b32.cont [14/16] 0.0, 128
      %260 = vxpose.xlu0.b32.cont [15/16] 0.0, 128
      %261 = vxpose.xlu0.b32.end [16/16] 0.0, 128
      %v262 = vpop.trf.xlu0
      %v263 = vpop.trf.xlu0
      %v264 = vpop.trf.xlu0
      %v265 = vpop.trf.xlu0
      %v266 = vpop.trf.xlu0
      %v267 = vpop.trf.xlu0
      %v268 = vpop.trf.xlu0
      %v269 = vpop.trf.xlu0
      %v270 = vpop.trf.xlu0
      %v271 = vpop.trf.xlu0
      %v272 = vpop.trf.xlu0
      %v273 = vpop.trf.xlu0
      %v274 = vpop.trf.xlu0
      %v275 = vpop.trf.xlu0
      %v276 = vpop.trf.xlu0
      %v277 = vpop.trf.xlu0
      %v279 = vsel %vm212, %v262, 0
      %281 = vmatpush.msra.mxu0 0.0
      %282 = vmatpush.msra.mxu0 0.0
      %283 = vmatpush.msra.mxu0 0.0
      %284 = vmatpush.msra.mxu0 0.0
      %285 = vmatpush.msra.mxu0 0.0
      %286 = vmatpush.msra.mxu0 0.0
      %287 = vmatpush.msra.mxu0 0.0
      %288 = vmatpush.msra.mxu0 0.0
      %289 = vmatpush.msra.mxu0 0.0
      %290 = vmatpush.msra.mxu0 0.0
      %291 = vmatpush.msra.mxu0 0.0
      %292 = vmatpush.msra.mxu0 0.0
      %293 = vmatpush.msra.mxu0 0.0
      %294 = vmatpush.msra.mxu0 0.0
      %295 = vmatpush.msra.mxu0 0.0
      %296 = vmatpush.msra.mxu0 %v245
      %297 = vmatmul.f32.gmra.mxu0 %v279
      %v298 = vpop.f32.mrf.mxu0
      %v299 = vadd.f32 0.0, %v298
      %300 = vdwg.mxu0
      %v301 = vpack.c.bf16 %v299, %v299
      %vm302 = vcmask 60416
      %303 = vst.msk [vmem:[%s208] sm:$0xf] %vm302, %v301
      %s304 = scalar_lea.vmem %s194, 4
      %v305 = vld [vmem:[%s304] sm:$0xf]
      %s306 = scalar_lea.vmem %s199, 4
      %v307 = vld [vmem:[%s306] sm:$0xf]
      %v309 = vsel %vm212, %v305, 0
      %v312 = vsel %vm216, %v307, 0
      %314 = vmatpush.bf16.msra.mxu0 0
      %315 = vmatpush.bf16.msra.mxu0 0
      %316 = vmatpush.bf16.msra.mxu0 0
      %317 = vmatpush.bf16.msra.mxu0 0
      %318 = vmatpush.bf16.msra.mxu0 0
      %319 = vmatpush.bf16.msra.mxu0 0
      %320 = vmatpush.bf16.msra.mxu0 0
      %321 = vmatpush.bf16.msra.mxu0 %v312
      %322 = vmatmul.bf16.gmra.mxu0 %v309
      %v323 = vpop.f32.mrf.mxu0
      %v324 = vadd.f32 0.0, %v323
      %v325 = vpop.f32.mrf.mxu0
      %326 = vdwg.mxu0
      %v327 = vsel %vm212, %v324, -inf
      %328 = vmax.xlane.f32.xlu0 %v327
      %v329 = vpop.xlane.xlu0 %328
      %v330 = vsub.f32 %v324, %v329
      %v331 = vmul.f32 %v330, 1.442695
      %v332 = vpow.pop %v331
      %v333 = vsel %vm212, %v332, 0.0
      %334 = vadd.xlane.f32.xlu0 %v333
      %v335 = vpop.xlane.xlu0 %334
      %v336 = vrcp.pop %v335
      %v337 = vmul.f32 %v332, %v336
      %s338 = scalar_lea.vmem %s204, 4
      %v339 = vld [vmem:[%s338] sm:$0xf]
      %v340 = vunpack.c.l.bf16 %v339
      %341 = vxpose.xlu0.b32.start [1/16] %v337, 128
      %342 = vxpose.xlu0.b32.cont [2/16] 0.0, 128
      %343 = vxpose.xlu0.b32.cont [3/16] 0.0, 128
      %344 = vxpose.xlu0.b32.cont [4/16] 0.0, 128
      %345 = vxpose.xlu0.b32.cont [5/16] 0.0, 128
      %346 = vxpose.xlu0.b32.cont [6/16] 0.0, 128
      %347 = vxpose.xlu0.b32.cont [7/16] 0.0, 128
      %348 = vxpose.xlu0.b32.cont [8/16] 0.0, 128
      %349 = vxpose.xlu0.b32.cont [9/16] 0.0, 128
      %350 = vxpose.xlu0.b32.cont [10/16] 0.0, 128
      %351 = vxpose.xlu0.b32.cont [11/16] 0.0, 128
      %352 = vxpose.xlu0.b32.cont [12/16] 0.0, 128
      %353 = vxpose.xlu0.b32.cont [13/16] 0.0, 128
      %354 = vxpose.xlu0.b32.cont [14/16] 0.0, 128
      %355 = vxpose.xlu0.b32.cont [15/16] 0.0, 128
      %356 = vxpose.xlu0.b32.end [16/16] 0.0, 128
      %v357 = vpop.trf.xlu0
      %v358 = vpop.trf.xlu0
      %v359 = vpop.trf.xlu0
      %v360 = vpop.trf.xlu0
      %v361 = vpop.trf.xlu0
      %v362 = vpop.trf.xlu0
      %v363 = vpop.trf.xlu0
      %v364 = vpop.trf.xlu0
      %v365 = vpop.trf.xlu0
      %v366 = vpop.trf.xlu0
      %v367 = vpop.trf.xlu0
      %v368 = vpop.trf.xlu0
      %v369 = vpop.trf.xlu0
      %v370 = vpop.trf.xlu0
      %v371 = vpop.trf.xlu0
      %v372 = vpop.trf.xlu0
      %v374 = vsel %vm212, %v357, 0
      %376 = vmatpush.msra.mxu0 0.0
      %377 = vmatpush.msra.mxu0 0.0
      %378 = vmatpush.msra.mxu0 0.0
      %379 = vmatpush.msra.mxu0 0.0
      %380 = vmatpush.msra.mxu0 0.0
      %381 = vmatpush.msra.mxu0 0.0
      %382 = vmatpush.msra.mxu0 0.0
      %383 = vmatpush.msra.mxu0 0.0
      %384 = vmatpush.msra.mxu0 0.0
      %385 = vmatpush.msra.mxu0 0.0
      %386 = vmatpush.msra.mxu0 0.0
      %387 = vmatpush.msra.mxu0 0.0
      %388 = vmatpush.msra.mxu0 0.0
      %389 = vmatpush.msra.mxu0 0.0
      %390 = vmatpush.msra.mxu0 0.0
      %391 = vmatpush.msra.mxu0 %v340
      %392 = vmatmul.f32.gmra.mxu0 %v374
      %v393 = vpop.f32.mrf.mxu0
      %v394 = vadd.f32 0.0, %v393
      %395 = vdwg.mxu0
      %v396 = vpack.c.bf16 %v394, %v394
      %398 = vrot.lane.b32.xlu0 %v396, 8
      %v399 = vpop.permute.xlu0 %398
      %vm401 = vcmask 126016
      %402 = vst.msk [vmem:[%s208] sm:$0xf] %vm401, %v399
      %s403 = scalar_lea.vmem %s194, 8
      %v404 = vld [vmem:[%s403] sm:$0xf]
      %s405 = scalar_lea.vmem %s199, 8
      %v406 = vld [vmem:[%s405] sm:$0xf]
      %v408 = vsel %vm212, %v404, 0
      %v411 = vsel %vm216, %v406, 0
      %413 = vmatpush.bf16.msra.mxu0 0
      %414 = vmatpush.bf16.msra.mxu0 0
      %415 = vmatpush.bf16.msra.mxu0 0
      %416 = vmatpush.bf16.msra.mxu0 0
      %417 = vmatpush.bf16.msra.mxu0 0
      %418 = vmatpush.bf16.msra.mxu0 0
      %419 = vmatpush.bf16.msra.mxu0 0
      %420 = vmatpush.bf16.msra.mxu0 %v411
      %421 = vmatmul.bf16.gmra.mxu0 %v408
      %v422 = vpop.f32.mrf.mxu0
      %v423 = vadd.f32 0.0, %v422
      %v424 = vpop.f32.mrf.mxu0
      %425 = vdwg.mxu0
      %v426 = vsel %vm212, %v423, -inf
      %427 = vmax.xlane.f32.xlu0 %v426
      %v428 = vpop.xlane.xlu0 %427
      %v429 = vsub.f32 %v423, %v428
      %v430 = vmul.f32 %v429, 1.442695
      %v431 = vpow.pop %v430
      %v432 = vsel %vm212, %v431, 0.0
      %433 = vadd.xlane.f32.xlu0 %v432
      %v434 = vpop.xlane.xlu0 %433
      %v435 = vrcp.pop %v434
      %v436 = vmul.f32 %v431, %v435
      %s437 = scalar_lea.vmem %s204, 8
      %v438 = vld [vmem:[%s437] sm:$0xf]
      %v439 = vunpack.c.l.bf16 %v438
      %440 = vxpose.xlu0.b32.start [1/16] %v436, 128
      %441 = vxpose.xlu0.b32.cont [2/16] 0.0, 128
      %442 = vxpose.xlu0.b32.cont [3/16] 0.0, 128
      %443 = vxpose.xlu0.b32.cont [4/16] 0.0, 128
      %444 = vxpose.xlu0.b32.cont [5/16] 0.0, 128
      %445 = vxpose.xlu0.b32.cont [6/16] 0.0, 128
      %446 = vxpose.xlu0.b32.cont [7/16] 0.0, 128
      %447 = vxpose.xlu0.b32.cont [8/16] 0.0, 128
      %448 = vxpose.xlu0.b32.cont [9/16] 0.0, 128
      %449 = vxpose.xlu0.b32.cont [10/16] 0.0, 128
      %450 = vxpose.xlu0.b32.cont [11/16] 0.0, 128
      %451 = vxpose.xlu0.b32.cont [12/16] 0.0, 128
      %452 = vxpose.xlu0.b32.cont [13/16] 0.0, 128
      %453 = vxpose.xlu0.b32.cont [14/16] 0.0, 128
      %454 = vxpose.xlu0.b32.cont [15/16] 0.0, 128
      %455 = vxpose.xlu0.b32.end [16/16] 0.0, 128
      %v456 = vpop.trf.xlu0
      %v457 = vpop.trf.xlu0
      %v458 = vpop.trf.xlu0
      %v459 = vpop.trf.xlu0
      %v460 = vpop.trf.xlu0
      %v461 = vpop.trf.xlu0
      %v462 = vpop.trf.xlu0
      %v463 = vpop.trf.xlu0
      %v464 = vpop.trf.xlu0
      %v465 = vpop.trf.xlu0
      %v466 = vpop.trf.xlu0
      %v467 = vpop.trf.xlu0
      %v468 = vpop.trf.xlu0
      %v469 = vpop.trf.xlu0
      %v470 = vpop.trf.xlu0
      %v471 = vpop.trf.xlu0
      %v473 = vsel %vm212, %v456, 0
      %475 = vmatpush.msra.mxu0 0.0
      %476 = vmatpush.msra.mxu0 0.0
      %477 = vmatpush.msra.mxu0 0.0
      %478 = vmatpush.msra.mxu0 0.0
      %479 = vmatpush.msra.mxu0 0.0
      %480 = vmatpush.msra.mxu0 0.0
      %481 = vmatpush.msra.mxu0 0.0
      %482 = vmatpush.msra.mxu0 0.0
      %483 = vmatpush.msra.mxu0 0.0
      %484 = vmatpush.msra.mxu0 0.0
      %485 = vmatpush.msra.mxu0 0.0
      %486 = vmatpush.msra.mxu0 0.0
      %487 = vmatpush.msra.mxu0 0.0
      %488 = vmatpush.msra.mxu0 0.0
      %489 = vmatpush.msra.mxu0 0.0
      %490 = vmatpush.msra.mxu0 %v439
      %491 = vmatmul.f32.gmra.mxu0 %v473
      %v492 = vpop.f32.mrf.mxu0
      %v493 = vadd.f32 0.0, %v492
      %494 = vdwg.mxu0
      %v495 = vpack.c.bf16 %v493, %v493
      %497 = vrot.lane.b32.xlu0 %v495, 16
      %v498 = vpop.permute.xlu0 %497
      %vm500 = vcmask 191616
      %501 = vst.msk [vmem:[%s208] sm:$0xf] %vm500, %v498
      %s502 = scalar_lea.vmem %s194, 12
      %v503 = vld [vmem:[%s502] sm:$0xf]
      %s504 = scalar_lea.vmem %s199, 12
      %v505 = vld [vmem:[%s504] sm:$0xf]
      %v507 = vsel %vm212, %v503, 0
      %v510 = vsel %vm216, %v505, 0
      %512 = vmatpush.bf16.msra.mxu0 0
      %513 = vmatpush.bf16.msra.mxu0 0
      %514 = vmatpush.bf16.msra.mxu0 0
      %515 = vmatpush.bf16.msra.mxu0 0
      %516 = vmatpush.bf16.msra.mxu0 0
      %517 = vmatpush.bf16.msra.mxu0 0
      %518 = vmatpush.bf16.msra.mxu0 0
      %519 = vmatpush.bf16.msra.mxu0 %v510
      %520 = vmatmul.bf16.gmra.mxu0 %v507
      %v521 = vpop.f32.mrf.mxu0
      %v522 = vadd.f32 0.0, %v521
      %v523 = vpop.f32.mrf.mxu0
      %524 = vdwg.mxu0
      %v525 = vsel %vm212, %v522, -inf
      %526 = vmax.xlane.f32.xlu0 %v525
      %v527 = vpop.xlane.xlu0 %526
      %v528 = vsub.f32 %v522, %v527
      %v529 = vmul.f32 %v528, 1.442695
      %v530 = vpow.pop %v529
      %v531 = vsel %vm212, %v530, 0.0
      %532 = vadd.xlane.f32.xlu0 %v531
      %v533 = vpop.xlane.xlu0 %532
      %v534 = vrcp.pop %v533
      %v535 = vmul.f32 %v530, %v534
      %s536 = scalar_lea.vmem %s204, 12
      %v537 = vld [vmem:[%s536] sm:$0xf]
      %v538 = vunpack.c.l.bf16 %v537
      %539 = vxpose.xlu0.b32.start [1/16] %v535, 128
      %540 = vxpose.xlu0.b32.cont [2/16] 0.0, 128
      %541 = vxpose.xlu0.b32.cont [3/16] 0.0, 128
      %542 = vxpose.xlu0.b32.cont [4/16] 0.0, 128
      %543 = vxpose.xlu0.b32.cont [5/16] 0.0, 128
      %544 = vxpose.xlu0.b32.cont [6/16] 0.0, 128
      %545 = vxpose.xlu0.b32.cont [7/16] 0.0, 128
      %546 = vxpose.xlu0.b32.cont [8/16] 0.0, 128
      %547 = vxpose.xlu0.b32.cont [9/16] 0.0, 128
      %548 = vxpose.xlu0.b32.cont [10/16] 0.0, 128
      %549 = vxpose.xlu0.b32.cont [11/16] 0.0, 128
      %550 = vxpose.xlu0.b32.cont [12/16] 0.0, 128
      %551 = vxpose.xlu0.b32.cont [13/16] 0.0, 128
      %552 = vxpose.xlu0.b32.cont [14/16] 0.0, 128
      %553 = vxpose.xlu0.b32.cont [15/16] 0.0, 128
      %554 = vxpose.xlu0.b32.end [16/16] 0.0, 128
      %v555 = vpop.trf.xlu0
      %v556 = vpop.trf.xlu0
      %v557 = vpop.trf.xlu0
      %v558 = vpop.trf.xlu0
      %v559 = vpop.trf.xlu0
      %v560 = vpop.trf.xlu0
      %v561 = vpop.trf.xlu0
      %v562 = vpop.trf.xlu0
      %v563 = vpop.trf.xlu0
      %v564 = vpop.trf.xlu0
      %v565 = vpop.trf.xlu0
      %v566 = vpop.trf.xlu0
      %v567 = vpop.trf.xlu0
      %v568 = vpop.trf.xlu0
      %v569 = vpop.trf.xlu0
      %v570 = vpop.trf.xlu0
      %v572 = vsel %vm212, %v555, 0
      %574 = vmatpush.msra.mxu0 0.0
      %575 = vmatpush.msra.mxu0 0.0
      %576 = vmatpush.msra.mxu0 0.0
      %577 = vmatpush.msra.mxu0 0.0
      %578 = vmatpush.msra.mxu0 0.0
      %579 = vmatpush.msra.mxu0 0.0
      %580 = vmatpush.msra.mxu0 0.0
      %581 = vmatpush.msra.mxu0 0.0
      %582 = vmatpush.msra.mxu0 0.0
      %583 = vmatpush.msra.mxu0 0.0
      %584 = vmatpush.msra.mxu0 0.0
      %585 = vmatpush.msra.mxu0 0.0
      %586 = vmatpush.msra.mxu0 0.0
      %587 = vmatpush.msra.mxu0 0.0
      %588 = vmatpush.msra.mxu0 0.0
      %589 = vmatpush.msra.mxu0 %v538
      %590 = vmatmul.f32.gmra.mxu0 %v572
      %v591 = vpop.f32.mrf.mxu0
      %v592 = vadd.f32 0.0, %v591
      %593 = vdwg.mxu0
      %v594 = vpack.c.bf16 %v592, %v592
      %596 = vrot.lane.b32.xlu0 %v594, 24
      %v597 = vpop.permute.xlu0 %596
      %vm599 = vcmask 257216
      %600 = vst.msk [vmem:[%s208] sm:$0xf] %vm599, %v597
      %p601 = scmp.lt.s32.totalorder %s14, 1
      %s602 = scalar_select %p601, %s14, 1
      %s603 = smul.addr %s602, 4
      %s604 = scalar_lea.vmem %s3, %s603
      // Predicated region
      $region33: #{multi_head_attention_forward.4} parent=31 // pred_check
        %p605 = pneg %p110
      $region34: #{multi_head_attention_forward.4} parent=31 // pred_check_branch
        %607 = sbr.rel (%p605) target = $region36
      $region35: #{multi_head_attention_forward.4} parent=31 // pred_region
        _
      $region36: #{multi_head_attention_forward.4} parent=31 // pred_fallthru
        _
    $region32: #{multi_head_attention_forward.4} parent=5 // pred_fallthru
      _
    %p608 = scmp.le.s32.totalorder 2, %s9
    // Predicated region
    $region37: #{multi_head_attention_forward.4} parent=5 // pred_check
      %p609 = pneg %p608
    $region38: #{multi_head_attention_forward.4} parent=5 // pred_check_branch
      %611 = sbr.rel (%p609) target = $region40
    $region39: #{multi_head_attention_forward.4} parent=5 // pred_region
      %s612 = ssub.s32 %s9, 2
      // Predicated region
      $region41: #{multi_head_attention_forward.4} parent=39 // pred_check
        %p613 = pneg %p116
      $region42: #{multi_head_attention_forward.4} parent=39 // pred_check_branch
        %615 = sbr.rel (%p613) target = $region44
      $region43: #{multi_head_attention_forward.4} parent=39 // pred_region
        %p616 = scmp.lt.s32.totalorder %s15, 1
        %s617 = scalar_select %p616, %s15, 1
        %s618 = smul.addr %s617, 4
        %s619 = scalar_lea.vmem %s3, %s618
      $region44: #{multi_head_attention_forward.4} parent=39 // pred_fallthru
        _
    $region40: #{multi_head_attention_forward.4} parent=5 // pred_fallthru
      _
  $region6: #{multi_head_attention_forward.4} parent=0 // loop_footer
    %s13 = sadd.s32 1, %s9
  $region7: #{multi_head_attention_forward.4} parent=0 // loop_footer_branch
    %8 = sbr.rel target = $region3
  $region8: #{multi_head_attention_forward.4} parent=0 // loop_exit
    _

</llo_original>
